<compile_context>
chip_gen: v6e
topology: v6e:2x2x1
jax: 0.10.0
libtpu: 0.0.40
codegen_flags: <defaults>
</compile_context>

<pallas_src>
import functools

import jax
import jax.numpy as jnp
from jax.experimental import pallas as pl
from jax.experimental.pallas import tpu as pltpu


def _round_up(x, m):
    return (x + m - 1) // m * m


def _cdiv(a, b):
    return -(-a // b)


def _cout_tiling(cout, t_cout):
    t_c = _round_up(min(t_cout, _round_up(cout, 16)), 16)   # bf16 sublane packing
    return t_c, _round_up(cout, t_c)


def _hw_tiling(hw, t_hw):
    t = _round_up(min(t_hw, _round_up(hw, 128)), 128)        # lane-dense tiles
    n = _cdiv(hw, t)
    t = _round_up(_cdiv(hw, n), 128)                          # minimize padded tail
    return t, n * t


# ----------------------------- Pallas kernel -------------------------------- #

def _odconv_kernel(kernel_num, w_ref, p_ref, csa_ref, fa_ref, ka_ref, o_ref, wagg_ref):
    """ODConv hot path for one (cout-tile, batch, hw-tile) grid point.

    w_ref    : (kernel_num, T_Cout, CKKp)  VMEM bf16  candidate weights (single-buffered)
    p_ref    : (1, CKKp, T_HW)             VMEM bf16  im2col patch tile of this batch
    csa_ref  : (1, 1, CKKp)                VMEM f32   channel*spatial attention (lanes)
    fa_ref   : (1, T_Cout, 1)              VMEM f32   filter attention (per out channel)
    ka_ref   : (B, kernel_num)             SMEM f32   kernel attention (softmax weights)
    o_ref    : (1, T_Cout, T_HW)           VMEM bf16
    wagg_ref : (T_Cout, CKKp)              VMEM bf16  scratch: folded weight, reused over HW
    """
    b = pl.program_id(1)
    hw = pl.program_id(2)

    # Fold kernel aggregation + channel*spatial attention once per (cout-tile, batch).
    # HW is the innermost grid axis, so the scratch persists across all HW tiles.
    @pl.when(hw == 0)
    def _():
        wagg = ka_ref[b, 0] * w_ref[0].astype(jnp.float32)
        for n in range(1, kernel_num):
            wagg = wagg + ka_ref[b, n] * w_ref[n].astype(jnp.float32)
        wagg = wagg * csa_ref[0]          # channel*spatial attention along CKK (lanes)
        wagg_ref[...] = wagg.astype(wagg_ref.dtype)

    # One bf16 MXU matmul with f32 accumulation; filter attention is applied to the
    # exact f32 accumulator, then a single cast to the bf16 output.
    acc = jnp.dot(wagg_ref[...], p_ref[0], preferred_element_type=jnp.float32)
    o_ref[0] = (acc * fa_ref[0]).astype(o_ref.dtype)


# ------------------------------ JAX glue ------------------------------------ #

def _im2col(x, k, stride, padding, dilation):
    """x: (B, C, H, W) -> patches (B, C*k*k, Hout*Wout), flat index = c*k*k + i*k + j."""
    B, C, H, W = x.shape
    Hout = (H + 2 * padding - dilation * (k - 1) - 1) // stride + 1
    Wout = (W + 2 * padding - dilation * (k - 1) - 1) // stride + 1
    xp = jnp.pad(x, ((0, 0), (0, 0), (padding, padding), (padding, padding)))
    cols = []
    for i in range(k):
        for j in range(k):
            ys, xs = i * dilation, j * dilation
            cols.append(xp[:, :,
                           ys:ys + (Hout - 1) * stride + 1:stride,
                           xs:xs + (Wout - 1) * stride + 1:stride])
    p = jnp.stack(cols, axis=2)                   # (B, C, k*k, Hout, Wout)
    return p.reshape(B, C * k * k, Hout * Wout), Hout, Wout


def _attention(x, p, temperature=1.0):
    """Attention branch (tiny): GAP + 1x1 convs as matmuls.
    Matches the spec's Attention.forward (which does NOT apply self.bn)."""
    gap = jnp.mean(x, axis=(2, 3))                                # (B, Cin)
    h = jax.nn.relu(gap @ p['fc_w'].T)                            # (B, A)
    ca = jax.nn.sigmoid((h @ p['channel_fc_w'].T + p['channel_fc_b']) / temperature)
    fa = jax.nn.sigmoid((h @ p['filter_fc_w'].T + p['filter_fc_b']) / temperature)
    sa = jax.nn.sigmoid((h @ p['spatial_fc_w'].T + p['spatial_fc_b']) / temperature)
    ka = jax.nn.softmax((h @ p['kernel_fc_w'].T + p['kernel_fc_b']) / temperature, axis=1)
    return ca, fa, sa, ka                         # (B,Cin) (B,Cout) (B,K*K) (B,N)


def prepare_weight(weight, *, t_cout=512):
    """Hoisted weight preprocessing: reshape + pad + bf16 cast of the candidate
    weights. Weights are static across forward calls, so cache this result."""
    kernel_num, cout, cin, k, _ = weight.shape
    ckk = cin * k * k
    ckk_p = _round_up(ckk, 128)
    _, cout_p = _cout_tiling(cout, t_cout)
    w = weight.reshape(kernel_num, cout, ckk)
    w = jnp.pad(w, ((0, 0), (0, cout_p - cout), (0, ckk_p - ckk)))
    return w.astype(jnp.bfloat16)                 # (N, Coutp, CKKp)


def odconv2d_forward(x, params, w_prepared=None, *, kernel_size, stride=1, padding=1,
                     dilation=1, kernel_num=4, t_hw=1024, t_cout=512,
                     out_dtype=jnp.bfloat16, vmem_limit_bytes=None):
    B, Cin, H, W = x.shape
    Cout = params['weight'].shape[1]
    K = kernel_size
    CKK = Cin * K * K

    # Attention branch on the f32 input (tiny).
    ca, fa, sa, ka = _attention(x, params)

    # im2col in bf16: ca is folded onto the weight so x needs no pre-scaling, and the
    # K^2-amplified patch tensor is materialized at half the HBM cost.
    patches, Hout, Wout = _im2col(x.astype(jnp.bfloat16), K, stride, padding, dilation)
    HW = Hout * Wout

    ckk_p = _round_up(CKK, 128)
    t_hw_eff, hw_p = _hw_tiling(HW, t_hw)
    t_cout_eff, cout_p = _cout_tiling(Cout, t_cout)

    # Cached padded bf16 candidate weights (fall back to inline prep if shape mismatch).
    if (w_prepared is None
            or w_prepared.shape != (kernel_num, cout_p, ckk_p)
            or w_prepared.dtype != jnp.bfloat16):
        w_prepared = prepare_weight(params['weight'], t_cout=t_cout)

    patches = jnp.pad(patches, ((0, 0), (0, ckk_p - CKK), (0, hw_p - HW)))   # (B,CKKp,HWp) bf16

    # ca (per channel) x sa (per tap) fold into one lane-dense per-CKK scale.
    csa = (ca[:, :, None] * sa[:, None, :]).reshape(B, 1, CKK)               # idx c*K*K + t
    csa = jnp.pad(csa, ((0, 0), (0, 0), (0, ckk_p - CKK)))                   # (B,1,CKKp) f32
    fa_col = jnp.pad(fa, ((0, 0), (0, cout_p - Cout)))[:, :, None]           # (B,Coutp,1) f32

    # Candidate-weight block only changes with the outermost cout-tile axis:
    # single-buffer it to halve its VMEM footprint (big win on v7x's 64 MiB VMEM).
    if hasattr(pl, "Buffered"):
        w_spec = pl.BlockSpec((kernel_num, t_cout_eff, ckk_p),
                              lambda ct, b, hw: (0, ct, 0),
                              pipeline_mode=pl.Buffered(1))
        n_wbuf = 1
    else:
        w_spec = pl.BlockSpec((kernel_num, t_cout_eff, ckk_p),
                              lambda ct, b, hw: (0, ct, 0))
        n_wbuf = 2

    out_bytes = jnp.dtype(out_dtype).itemsize
    if vmem_limit_bytes is None:
        blocks = (n_wbuf * kernel_num * t_cout_eff * ckk_p * 2      # candidate weights (bf16)
                  + 2 * ckk_p * t_hw_eff * 2                        # patches (bf16, 2 bufs)
                  + 2 * ckk_p * 4 + 2 * t_cout_eff * 4              # csa / fa
                  + 2 * t_cout_eff * t_hw_eff * out_bytes           # output (2 bufs)
                  + t_cout_eff * ckk_p * 2                          # wagg scratch (bf16)
                  + t_cout_eff * ckk_p * 4)                         # f32 fold temporary
        vmem_limit_bytes = int(min(max(1.25 * blocks + (8 << 20), 32 << 20), 100 << 20))

    # Grid: cout-tile OUTERMOST -> weights read once per cout tile (not once per batch);
    # hw innermost carries the wagg scratch -> "arbitrary"; leading axes megacore-parallel.
    grid = (cout_p // t_cout_eff, B, hw_p // t_hw_eff)
    kernel = functools.partial(_odconv_kernel, kernel_num)
    out_flat = pl.pallas_call(
        kernel,
        out_shape=jax.ShapeDtypeStruct((B, cout_p, hw_p), out_dtype),
        grid=grid,
        in_specs=[
            w_spec,
            pl.BlockSpec((1, ckk_p, t_hw_eff), lambda ct, b, hw: (b, 0, hw)),
            pl.BlockSpec((1, 1, ckk_p), lambda ct, b, hw: (b, 0, 0)),
            pl.BlockSpec((1, t_cout_eff, 1), lambda ct, b, hw: (b, ct, 0)),
            pl.BlockSpec(memory_space=pltpu.MemorySpace.SMEM),      # kernel attn scalars
        ],
        out_specs=pl.BlockSpec((1, t_cout_eff, t_hw_eff), lambda ct, b, hw: (b, ct, hw)),
        scratch_shapes=[pltpu.VMEM((t_cout_eff, ckk_p), jnp.bfloat16)],
        compiler_params=pltpu.CompilerParams(
            dimension_semantics=("parallel", "parallel", "arbitrary"),
            vmem_limit_bytes=vmem_limit_bytes),
    )(w_prepared, patches, csa, fa_col, ka)

    return out_flat[:, :Cout, :HW].reshape(B, Cout, Hout, Wout)


# ------------------------- reference (pure JAX) ------------------------------ #

def odconv2d_reference(x, p, *, kernel_size, stride, padding, dilation, kernel_num):
    B, Cin, H, W = x.shape
    K = kernel_size
    ca, fa, sa, ka = _attention(x, p)
    xs = x * ca[:, :, None, None]
    wagg = jnp.einsum('bn,nocij->bocij', ka, p['weight'])
    wagg = wagg * sa.reshape(B, 1, 1, K, K)
    outs = []
    for b in range(B):
        o = jax.lax.conv_general_dilated(
            xs[b:b + 1], wagg[b],
            window_strides=(stride, stride),
            padding=[(padding, padding), (padding, padding)],
            rhs_dilation=(dilation, dilation),
            dimension_numbers=('NCHW', 'OIHW', 'NCHW'))
        outs.append(o)
    out = jnp.concatenate(outs, axis=0)
    return out * fa[:, :, None, None]


# --------------------------- parameter init ---------------------------------- #

def init_params(key, in_planes, out_planes, kernel_size, kernel_num,
                reduction=0.0625, min_channel=16):
    A = max(int(in_planes * reduction), min_channel)
    ks = jax.random.split(key, 6)

    def kaiming(k, shape, fan_out):
        return jax.random.normal(k, shape, jnp.float32) * jnp.sqrt(2.0 / fan_out)

    p = {
        # (kernel_num, Cout, Cin, K, K), kaiming fan_out per candidate kernel
        'weight': kaiming(ks[0], (kernel_num, out_planes, in_planes, kernel_size, kernel_size),
                          out_planes * kernel_size * kernel_size),
        'fc_w': kaiming(ks[1], (A, in_planes), A),
        'channel_fc_w': kaiming(ks[2], (in_planes, A), in_planes),
        'channel_fc_b': jnp.zeros((in_planes,), jnp.float32),
        'filter_fc_w': kaiming(ks[3], (out_planes, A), out_planes),
        'filter_fc_b': jnp.zeros((out_planes,), jnp.float32),
        'spatial_fc_w': kaiming(ks[4], (kernel_size * kernel_size, A), kernel_size * kernel_size),
        'spatial_fc_b': jnp.zeros((kernel_size * kernel_size,), jnp.float32),
        'kernel_fc_w': kaiming(ks[5], (kernel_num, A), kernel_num),
        'kernel_fc_b': jnp.zeros((kernel_num,), jnp.float32),
    }
    return p, A


# --------------------------------- main --------------------------------------- #

if __name__ == "__main__":
    B, Cin, H, W = 2, 4, 16, 16
    Cout, K, N = 8, 3, 4
    stride, padding, dilation = 1, 1, 1

    key = jax.random.PRNGKey(0)
    pkey, xkey = jax.random.split(key)
    params, _ = init_params(pkey, Cin, Cout, K, N)
    x = jax.random.normal(xkey, (B, Cin, H, W), jnp.float32)

    # Hoisted weight preprocessing (cached across forward calls).
    w_prep = prepare_weight(params['weight'], t_cout=512)

    fwd = jax.jit(functools.partial(
        odconv2d_forward, kernel_size=K, stride=stride, padding=padding,
        dilation=dilation, kernel_num=N, t_hw=128, t_cout=512))  # t_hw=128 exercises HW tiling
    out = jax.block_until_ready(fwd(x, params, w_prep))

    ref = odconv2d_reference(x, params, kernel_size=K, stride=stride,
                             padding=padding, dilation=dilation, kernel_num=N)
    assert out.shape == (B, Cout, H, W), out.shape
    out_f32 = out.astype(jnp.float32)
    # bf16 matmul operands + bf16 output (f32 accumulate) -> loosened tolerance.
    if not jnp.allclose(out_f32, ref, atol=3e-2, rtol=3e-2):
        err = float(jnp.max(jnp.abs(out_f32 - ref)))
        raise AssertionError(f"Pallas ODConv2d output mismatch (max abs err {err:.4g})")
    print("KERNEL_OK")
</pallas_src>

<mosaic_0001>
module attributes {stable_mosaic.version = 11 : i64} {
  func.func @_odconv_kernel(%arg0: i32, %arg1: i32, %arg2: i32, %arg3: memref<4x16x128xbf16, #tpu.memory_space<vmem>>, %arg4: memref<1x128x128xbf16, #tpu.memory_space<vmem>>, %arg5: memref<1x1x128xf32, #tpu.memory_space<vmem>>, %arg6: memref<1x16x1xf32, #tpu.memory_space<vmem>>, %arg7: memref<2x4xf32, #tpu.memory_space<smem>>, %arg8: memref<1x16x128xbf16, #tpu.memory_space<vmem>>, %arg9: memref<16x128xbf16, #tpu.memory_space<vmem>>) attributes {dimension_semantics = [#tpu.dimension_semantics<parallel>, #tpu.dimension_semantics<parallel>, #tpu.dimension_semantics<arbitrary>], iteration_bounds = array<i64: 1, 2, 2>, scalar_prefetch = 0 : i64, scratch_operands = 1 : i64, tpu.core_type = #tpu.core_type<tc>, window_params = [{pipeline_mode = #tpu.pipeline_mode<synchronous>, transform_indices = @transform_0, window_bounds = array<i64: 4, 16, 128>}, {transform_indices = @transform_1, window_bounds = array<i64: 1, 128, 128>}, {transform_indices = @transform_2, window_bounds = array<i64: 1, 1, 128>}, {transform_indices = @transform_3, window_bounds = array<i64: 1, 16, 1>}, {transform_indices = @transform_4, window_bounds = array<i64: 2, 4>}, {transform_indices = @transform_5, window_bounds = array<i64: 1, 16, 128>}]} {
    %c0_i32 = arith.constant 0 : i32
    %0 = arith.cmpi eq, %arg2, %c0_i32 : i32
    %1 = arith.extui %0 : i1 to i32
    %c0_i32_0 = arith.constant 0 : i32
    %2 = arith.cmpi ne, %1, %c0_i32_0 : i32
    scf.if %2 {
      %15 = arith.index_cast %arg1 : i32 to index
      %c0_11 = arith.constant 0 : index
      %16 = memref.load %arg7[%15, %c0_11] : memref<2x4xf32, #tpu.memory_space<smem>>
      %c0_12 = arith.constant 0 : index
      %c0_13 = arith.constant 0 : index
      %c0_14 = arith.constant 0 : index
      %17 = vector.load %arg3[%c0_12, %c0_13, %c0_14] : memref<4x16x128xbf16, #tpu.memory_space<vmem>>, vector<1x16x128xbf16>
      %18 = vector.shape_cast %17 : vector<1x16x128xbf16> to vector<16x128xbf16>
      %19 = arith.extf %18 : vector<16x128xbf16> to vector<16x128xf32>
      %20 = vector.broadcast %16 : f32 to vector<16x128xf32>
      %21 = arith.mulf %20, %19 : vector<16x128xf32>
      %22 = arith.index_cast %arg1 : i32 to index
      %c1 = arith.constant 1 : index
      %23 = memref.load %arg7[%22, %c1] : memref<2x4xf32, #tpu.memory_space<smem>>
      %c1_15 = arith.constant 1 : index
      %c0_16 = arith.constant 0 : index
      %c0_17 = arith.constant 0 : index
      %24 = vector.load %arg3[%c1_15, %c0_16, %c0_17] : memref<4x16x128xbf16, #tpu.memory_space<vmem>>, vector<1x16x128xbf16>
      %25 = vector.shape_cast %24 : vector<1x16x128xbf16> to vector<16x128xbf16>
      %26 = arith.extf %25 : vector<16x128xbf16> to vector<16x128xf32>
      %27 = vector.broadcast %23 : f32 to vector<16x128xf32>
      %28 = arith.mulf %27, %26 : vector<16x128xf32>
      %29 = arith.addf %21, %28 : vector<16x128xf32>
      %30 = arith.index_cast %arg1 : i32 to index
      %c2 = arith.constant 2 : index
      %31 = memref.load %arg7[%30, %c2] : memref<2x4xf32, #tpu.memory_space<smem>>
      %c2_18 = arith.constant 2 : index
      %c0_19 = arith.constant 0 : index
      %c0_20 = arith.constant 0 : index
      %32 = vector.load %arg3[%c2_18, %c0_19, %c0_20] : memref<4x16x128xbf16, #tpu.memory_space<vmem>>, vector<1x16x128xbf16>
      %33 = vector.shape_cast %32 : vector<1x16x128xbf16> to vector<16x128xbf16>
      %34 = arith.extf %33 : vector<16x128xbf16> to vector<16x128xf32>
      %35 = vector.broadcast %31 : f32 to vector<16x128xf32>
      %36 = arith.mulf %35, %34 : vector<16x128xf32>
      %37 = arith.addf %29, %36 : vector<16x128xf32>
      %38 = arith.index_cast %arg1 : i32 to index
      %c3 = arith.constant 3 : index
      %39 = memref.load %arg7[%38, %c3] : memref<2x4xf32, #tpu.memory_space<smem>>
      %c3_21 = arith.constant 3 : index
      %c0_22 = arith.constant 0 : index
      %c0_23 = arith.constant 0 : index
      %40 = vector.load %arg3[%c3_21, %c0_22, %c0_23] : memref<4x16x128xbf16, #tpu.memory_space<vmem>>, vector<1x16x128xbf16>
      %41 = vector.shape_cast %40 : vector<1x16x128xbf16> to vector<16x128xbf16>
      %42 = arith.extf %41 : vector<16x128xbf16> to vector<16x128xf32>
      %43 = vector.broadcast %39 : f32 to vector<16x128xf32>
      %44 = arith.mulf %43, %42 : vector<16x128xf32>
      %45 = arith.addf %37, %44 : vector<16x128xf32>
      %c0_24 = arith.constant 0 : index
      %c0_25 = arith.constant 0 : index
      %c0_26 = arith.constant 0 : index
      %46 = vector.load %arg5[%c0_24, %c0_25, %c0_26] : memref<1x1x128xf32, #tpu.memory_space<vmem>>, vector<1x1x128xf32>
      %47 = vector.shape_cast %46 : vector<1x1x128xf32> to vector<1x128xf32>
      %48 = vector.broadcast %47 : vector<1x128xf32> to vector<16x128xf32>
      %49 = arith.mulf %45, %48 : vector<16x128xf32>
      %50 = arith.truncf %49 : vector<16x128xf32> to vector<16x128xbf16>
      %c0_27 = arith.constant 0 : index
      %c0_28 = arith.constant 0 : index
      %51 = vector.load %arg9[%c0_27, %c0_28] : memref<16x128xbf16, #tpu.memory_space<vmem>>, vector<16x128xbf16>
      tpu.vector_store %arg9[%c0_27, %c0_28], %50 {strides = array<i32>} : memref<16x128xbf16, #tpu.memory_space<vmem>>, vector<16x128xbf16>,
    } else {
    }
    %c0 = arith.constant 0 : index
    %c0_1 = arith.constant 0 : index
    %3 = vector.load %arg9[%c0, %c0_1] : memref<16x128xbf16, #tpu.memory_space<vmem>>, vector<16x128xbf16>
    %c0_2 = arith.constant 0 : index
    %c0_3 = arith.constant 0 : index
    %c0_4 = arith.constant 0 : index
    %4 = vector.load %arg4[%c0_2, %c0_3, %c0_4] : memref<1x128x128xbf16, #tpu.memory_space<vmem>>, vector<1x128x128xbf16>
    %5 = vector.shape_cast %4 : vector<1x128x128xbf16> to vector<128x128xbf16>
    %cst = arith.constant dense<0.000000e+00> : vector<16x128xf32>
    %6 = tpu.matmul %3, %5, %cst {dimension_numbers = #tpu.dot_dimension_numbers<[1], [0], [0], [1], [0, 0, 1, 1], [], []>} : vector<16x128xbf16>, vector<128x128xbf16>, vector<16x128xf32> -> vector<16x128xf32>
    %c0_5 = arith.constant 0 : index
    %c0_6 = arith.constant 0 : index
    %c0_7 = arith.constant 0 : index
    %7 = vector.load %arg6[%c0_5, %c0_6, %c0_7] : memref<1x16x1xf32, #tpu.memory_space<vmem>>, vector<1x16x1xf32>
    %8 = vector.shape_cast %7 : vector<1x16x1xf32> to vector<16x1xf32>
    %9 = vector.broadcast %8 : vector<16x1xf32> to vector<16x128xf32>
    %10 = arith.mulf %6, %9 : vector<16x128xf32>
    %11 = arith.truncf %10 : vector<16x128xf32> to vector<16x128xbf16>
    %c0_8 = arith.constant 0 : index
    %c0_9 = arith.constant 0 : index
    %c0_10 = arith.constant 0 : index
    %12 = vector.load %arg8[%c0_8, %c0_9, %c0_10] : memref<1x16x128xbf16, #tpu.memory_space<vmem>>, vector<1x16x128xbf16>
    %13 = vector.shape_cast %12 : vector<1x16x128xbf16> to vector<16x128xbf16>
    %14 = vector.shape_cast %11 : vector<16x128xbf16> to vector<1x16x128xbf16>
    tpu.vector_store %arg8[%c0_8, %c0_9, %c0_10], %14 {strides = array<i32>} : memref<1x16x128xbf16, #tpu.memory_space<vmem>>, vector<1x16x128xbf16>,
    return
  }
  func.func @transform_0(%arg0: i32, %arg1: i32, %arg2: i32) -> (i32, i32, i32) {
    %c0_i32 = arith.constant 0 : i32
    %c0_i32_0 = arith.constant 0 : i32
    %c0_i32_1 = arith.constant 0 : i32
    return %c0_i32, %arg0, %c0_i32_0 : i32, i32, i32
  }
  func.func @transform_1(%arg0: i32, %arg1: i32, %arg2: i32) -> (i32, i32, i32) {
    %c0_i32 = arith.constant 0 : i32
    %c0_i32_0 = arith.constant 0 : i32
    return %arg1, %c0_i32, %arg2 : i32, i32, i32
  }
  func.func @transform_2(%arg0: i32, %arg1: i32, %arg2: i32) -> (i32, i32, i32) {
    %c0_i32 = arith.constant 0 : i32
    %c0_i32_0 = arith.constant 0 : i32
    %c0_i32_1 = arith.constant 0 : i32
    return %arg1, %c0_i32, %c0_i32_0 : i32, i32, i32
  }
  func.func @transform_3(%arg0: i32, %arg1: i32, %arg2: i32) -> (i32, i32, i32) {
    %c0_i32 = arith.constant 0 : i32
    %c0_i32_0 = arith.constant 0 : i32
    return %arg1, %arg0, %c0_i32 : i32, i32, i32
  }
  func.func @transform_4(%arg0: i32, %arg1: i32, %arg2: i32) -> (i32, i32) {
    %c0_i32 = arith.constant 0 : i32
    %c0_i32_0 = arith.constant 0 : i32
    %c0_i32_1 = arith.constant 0 : i32
    return %c0_i32, %c0_i32_0 : i32, i32
  }
  func.func @transform_5(%arg0: i32, %arg1: i32, %arg2: i32) -> (i32, i32, i32) {
    %c0_i32 = arith.constant 0 : i32
    return %arg1, %arg0, %arg2 : i32, i32, i32
  }
}

</mosaic_0001>

<llo_original>
// kernel: odconv2d_forward.1
$region0: #{odconv2d_forward.1}
  #allocation0 [shape = 'u32[]', space=smem, size = 0x4, offset = 0x4, fixed_abs, tag = 'smem constant byte address 0x4 - core index']
  #allocation1 [shape = 'u32[144,128]{1,0:T(1,128)}', space=vmem, size = 0x12000, scoped, tag = 'internal scratch']
  #allocation2 [shape = 'bf16[16,128]{1,0:T(8,128)(2,1)}', space=vmem, size = 0x1000, scoped, tag = 'scratch operand']
  %s0 = inlined_call_operand.vmem [shape: bf16[4,16,128], index: 0, kind: input, shape index: {}]
  %s1 = inlined_call_operand.vmem [shape: bf16[2,128,256], index: 1, kind: input, shape index: {}]
  %s2 = inlined_call_operand.vmem [shape: f32[2,1,128], index: 2, kind: input, shape index: {}]
  %s3 = inlined_call_operand.vmem [shape: f32[2,16,1], index: 3, kind: input, shape index: {}]
  %s4 = inlined_call_operand.vmem [shape: f32[2,4], index: 4, kind: input, shape index: {}]
  %s5 = inlined_call_operand.vmem [shape: bf16[2,16,256], index: 5, kind: output, shape index: {}]
  %s6 = sld [smem:[#allocation0]]
  $region139: #{odconv2d_forward.1} parent=0
    _
  %s8 = ssub.s32 1, %s6
  %s9 = scalar_select 0, %s8, %s6
  $region1: #{odconv2d_forward.1} parent=0
    #allocation3 [shape = 'u8[65536]{0}', space=vmem, size = 0x10000, scoped, tag = 'input window, operand 1']
    #allocation4 [shape = 'u8[1024]{0}', space=smem, size = 0x400, scoped, tag = 'input window, operand 4, single buffered']
    #allocation5 [shape = 's32[2]{0}', space=sflag, size = 0x8, scoped, tag = 'scoped memory for odconv2d_forward.1']
    #allocation6 [shape = 'u8[8192]{0}', space=vmem, size = 0x2000, scoped, tag = 'output window, operand 0']
    %10 = vsyncpa [#allocation5], 0
    loop: start=0, step=1, limit=6
    $region2: #{odconv2d_forward.1} parent=1 // loop_pre_header
      _
    $region3: #{odconv2d_forward.1} parent=1 // loop_header
      %s12 = sphi 0, %s16
      %p13 = scmp.ge.s32.totalorder %s12, 6
      %s19 = sphi 0, %s38
      %s20 = sphi 0, %s34
      %s21 = sphi 0, %s30
      %s22 = sphi 0, %s19
      %s23 = sphi 0, %s20
      %s24 = sphi 0, %s21
      %s25 = sphi 0, %s22
      %s26 = sphi 0, %s23
      %s27 = sphi 0, %s24
      %s41 = sphi 0, %s43
      %s44 = sphi 0, %s41
      %s45 = sphi 0, %s44
      %s61 = sphi 0, %s45
      %s69 = sphi 0, %s71
      %s72 = sphi 0, %s69
      %s73 = sphi 0, %s72
      %s89 = sphi 0, %s73
      %s95 = sphi 0, %s97
      %s98 = sphi 0, %s95
      %s99 = sphi 0, %s98
      %s115 = sphi 0, %s99
      %s123 = sphi 0, %s125
      %s126 = sphi 0, %s123
      %s127 = sphi 0, %s126
      %s143 = sphi 0, %s127
      %s147 = sphi 0, %s147
      %s149 = sphi 0, %s147
      %s150 = sphi 0, %s149
      %s164 = sphi 0, %s150
      %s174 = sphi 0, %s176
      %s177 = sphi 0, %s174
      %s178 = sphi 0, %s177
      %s194 = sphi 0, %s178
    $region4: #{odconv2d_forward.1} parent=1 // loop_header_branch
      %15 = sbr.rel (%p13) target = $region8
    $region5: #{odconv2d_forward.1} parent=1 // loop_body
      %s17 = ssub.s32 %s12, 1
      %s18 = ssub.s32 %s12, 2
      %s28 = sadd.s32 1, %s21
      %p29 = scmp.ge.s32.totalorder %s28, 2
      %s30 = scalar_select %p29, 0, %s28
      %s31 = sadd.s32 1, %s20
      %s32 = scalar_select %p29, %s31, %s20
      %p33 = scmp.ge.s32.totalorder %s32, 2
      %s34 = scalar_select %p33, 0, %s32
      %s35 = sadd.s32 1, %s19
      %s36 = scalar_select %p33, %s35, %s19
      %p37 = scmp.ge.s32.totalorder %s36, 1
      %s38 = scalar_select %p37, 0, %s36
      %s39 = ssub.s32 %s19, %s38
      %p40 = scmp.eq.s32.totalorder %s39, 0
      %s42 = sadd.s32 %s41, 1
      %s43 = scalar_select %p40, %s41, %s42
      %p46 = pneg %p40
      %p47 = scmp.eq.s32.totalorder %s12, 3
      %p48 = por %p46, %p47
      %p49 = scmp.ne.s32.totalorder %s41, %s44
      %p50 = scmp.eq.s32.totalorder %s12, 0
      %p51 = por %p49, %p50
      %p52 = scmp.ne.s32.totalorder %s41, %s44
      %p53 = scmp.eq.s32.totalorder %s17, 3
      %p54 = por %p52, %p53
      %p55 = scmp.ne.s32.totalorder %s44, %s45
      %p56 = scmp.eq.s32.totalorder %s17, 0
      %p57 = por %p55, %p56
      %p58 = scmp.ne.s32.totalorder %s44, %s45
      %p59 = scmp.eq.s32.totalorder %s18, 3
      %p60 = por %p58, %p59
      %p62 = scmp.ne.s32.totalorder %s45, %s61
      %p63 = scmp.eq.s32.totalorder %s18, 0
      %p64 = por %p62, %p63
      %s65 = ssub.s32 %s20, %s34
      %s66 = ssub.s32 %s21, %s30
      %s67 = sor.u32 %s65, %s66
      %p68 = scmp.eq.s32.totalorder %s67, 0
      %s70 = sadd.s32 %s69, 1
      %s71 = scalar_select %p68, %s69, %s70
      %p74 = pneg %p68
      %p75 = scmp.eq.s32.totalorder %s12, 3
      %p76 = por %p74, %p75
      %p77 = scmp.ne.s32.totalorder %s69, %s72
      %p78 = scmp.eq.s32.totalorder %s12, 0
      %p79 = por %p77, %p78
      %p80 = scmp.ne.s32.totalorder %s69, %s72
      %p81 = scmp.eq.s32.totalorder %s17, 3
      %p82 = por %p80, %p81
      %p83 = scmp.ne.s32.totalorder %s72, %s73
      %p84 = scmp.eq.s32.totalorder %s17, 0
      %p85 = por %p83, %p84
      %p86 = scmp.ne.s32.totalorder %s72, %s73
      %p87 = scmp.eq.s32.totalorder %s18, 3
      %p88 = por %p86, %p87
      %p90 = scmp.ne.s32.totalorder %s73, %s89
      %p91 = scmp.eq.s32.totalorder %s18, 0
      %p92 = por %p90, %p91
      %s93 = ssub.s32 %s20, %s34
      %p94 = scmp.eq.s32.totalorder %s93, 0
      %s96 = sadd.s32 %s95, 1
      %s97 = scalar_select %p94, %s95, %s96
      %p100 = pneg %p94
      %p101 = scmp.eq.s32.totalorder %s12, 3
      %p102 = por %p100, %p101
      %p103 = scmp.ne.s32.totalorder %s95, %s98
      %p104 = scmp.eq.s32.totalorder %s12, 0
      %p105 = por %p103, %p104
      %p106 = scmp.ne.s32.totalorder %s95, %s98
      %p107 = scmp.eq.s32.totalorder %s17, 3
      %p108 = por %p106, %p107
      %p109 = scmp.ne.s32.totalorder %s98, %s99
      %p110 = scmp.eq.s32.totalorder %s17, 0
      %p111 = por %p109, %p110
      %p112 = scmp.ne.s32.totalorder %s98, %s99
      %p113 = scmp.eq.s32.totalorder %s18, 3
      %p114 = por %p112, %p113
      %p116 = scmp.ne.s32.totalorder %s99, %s115
      %p117 = scmp.eq.s32.totalorder %s18, 0
      %p118 = por %p116, %p117
      %s119 = ssub.s32 %s20, %s34
      %s120 = ssub.s32 %s19, %s38
      %s121 = sor.u32 %s119, %s120
      %p122 = scmp.eq.s32.totalorder %s121, 0
      %s124 = sadd.s32 %s123, 1
      %s125 = scalar_select %p122, %s123, %s124
      %p128 = pneg %p122
      %p129 = scmp.eq.s32.totalorder %s12, 3
      %p130 = por %p128, %p129
      %p131 = scmp.ne.s32.totalorder %s123, %s126
      %p132 = scmp.eq.s32.totalorder %s12, 0
      %p133 = por %p131, %p132
      %p134 = scmp.ne.s32.totalorder %s123, %s126
      %p135 = scmp.eq.s32.totalorder %s17, 3
      %p136 = por %p134, %p135
      %p137 = scmp.ne.s32.totalorder %s126, %s127
      %p138 = scmp.eq.s32.totalorder %s17, 0
      %p139 = por %p137, %p138
      %p140 = scmp.ne.s32.totalorder %s126, %s127
      %p141 = scmp.eq.s32.totalorder %s18, 3
      %p142 = por %p140, %p141
      %p144 = scmp.ne.s32.totalorder %s127, %s143
      %p145 = scmp.eq.s32.totalorder %s18, 0
      %p146 = por %p144, %p145
      %s148 = sadd.s32 %s147, 1
      %p151 = scmp.eq.s32.totalorder %s12, 3
      %p152 = scmp.ne.s32.totalorder %s147, %s149
      %p153 = scmp.eq.s32.totalorder %s12, 0
      %p154 = por %p152, %p153
      %p155 = scmp.ne.s32.totalorder %s147, %s149
      %p156 = scmp.eq.s32.totalorder %s17, 3
      %p157 = por %p155, %p156
      %p158 = scmp.ne.s32.totalorder %s149, %s150
      %p159 = scmp.eq.s32.totalorder %s17, 0
      %p160 = por %p158, %p159
      %p161 = scmp.ne.s32.totalorder %s149, %s150
      %p162 = scmp.eq.s32.totalorder %s18, 3
      %p163 = por %p161, %p162
      %p165 = scmp.ne.s32.totalorder %s150, %s164
      %p166 = scmp.eq.s32.totalorder %s18, 0
      %p167 = por %p165, %p166
      %s168 = ssub.s32 %s20, %s34
      %s169 = ssub.s32 %s19, %s38
      %s170 = sor.u32 %s168, %s169
      %s171 = ssub.s32 %s21, %s30
      %s172 = sor.u32 %s170, %s171
      %p173 = scmp.eq.s32.totalorder %s172, 0
      %s175 = sadd.s32 %s174, 1
      %s176 = scalar_select %p173, %s174, %s175
      %p179 = pneg %p173
      %p180 = scmp.eq.s32.totalorder %s12, 3
      %p181 = por %p179, %p180
      %p182 = scmp.ne.s32.totalorder %s174, %s177
      %p183 = scmp.eq.s32.totalorder %s12, 0
      %p184 = por %p182, %p183
      %p185 = scmp.ne.s32.totalorder %s174, %s177
      %p186 = scmp.eq.s32.totalorder %s17, 3
      %p187 = por %p185, %p186
      %p188 = scmp.ne.s32.totalorder %s177, %s178
      %p189 = scmp.eq.s32.totalorder %s17, 0
      %p190 = por %p188, %p189
      %p191 = scmp.ne.s32.totalorder %s177, %s178
      %p192 = scmp.eq.s32.totalorder %s18, 3
      %p193 = por %p191, %p192
      %p195 = scmp.ne.s32.totalorder %s178, %s194
      %p196 = scmp.eq.s32.totalorder %s18, 0
      %p197 = por %p195, %p196
      %p198 = scmp.le.s32.totalorder 1, %s12
      %p199 = scmp.lt.s32.totalorder %s12, 5
      %p200 = pnand %p198, %p199
      %p201 = pneg %p200
      // Predicated region
      $region9: #{odconv2d_forward.1} parent=5 // pred_check
        _
      $region10: #{odconv2d_forward.1} parent=5 // pred_check_branch
        %203 = sbr.rel (%p200) target = $region12
      $region11: #{odconv2d_forward.1} parent=5 // pred_region
        %s204 = ssub.s32 %s12, 1
        // Predicated region
        $region13: #{odconv2d_forward.1} parent=11 // pred_check
          %p205 = pneg %p57
        $region14: #{odconv2d_forward.1} parent=11 // pred_check_branch
          %207 = sbr.rel (%p205) target = $region16
        $region15: #{odconv2d_forward.1} parent=11 // pred_region
          %s208 = smul.u32 2, %s22
          %p209 = scmp.lt.s32.totalorder %s208, 1
          %s210 = scalar_select %p209, %s208, 1
          %s211 = smul.addr %s210, 4
          %s212 = scalar_lea.vmem %s0, %s211
          %s213 = smul.u32 2, %s22
        $region16: #{odconv2d_forward.1} parent=11 // pred_fallthru
          _
        // Predicated region
        $region17: #{odconv2d_forward.1} parent=11 // pred_check
          %p214 = pneg %p160
        $region18: #{odconv2d_forward.1} parent=11 // pred_check_branch
          %216 = sbr.rel (%p214) target = $region20
        $region19: #{odconv2d_forward.1} parent=11 // pred_region
          %s218 = ssub.s32 32, 32
          %219 = vsyncadd [#allocation5], %s218
          %s221 = sshll.u32 %s4, 4
          %s222 = int_to_ptr.vmem [resolvable:$true] %s221
          %224 = dma.vmem_to_smem %s222, 32, [#allocation4], [#allocation5]
        $region20: #{odconv2d_forward.1} parent=11 // pred_fallthru
          _
      $region12: #{odconv2d_forward.1} parent=5 // pred_fallthru
        _
      %p225 = scmp.lt.s32.totalorder %s12, 4
      // Predicated region
      $region21: #{odconv2d_forward.1} parent=5 // pred_check
        %p226 = pneg %p225
      $region22: #{odconv2d_forward.1} parent=5 // pred_check_branch
        %228 = sbr.rel (%p226) target = $region24
      $region23: #{odconv2d_forward.1} parent=5 // pred_region
        // Predicated region
        $region25: #{odconv2d_forward.1} parent=23 // pred_check
          %p229 = pneg %p79
        $region26: #{odconv2d_forward.1} parent=23 // pred_check_branch
          %231 = sbr.rel (%p229) target = $region28
        $region27: #{odconv2d_forward.1} parent=23 // pred_region
          %s232 = sand.u32 %s69, 1
          %s233 = sand.u32 %s69, 1
          %s234 = smul.addr %s233, 64
          %s235 = scalar_lea.vmem [#allocation3], %s234
          %s236 = smul.addr %s20, 32
          %s237 = sadd.s32 %s21, %s236
          %s238 = smul.addr %s237, 4
          %s239 = scalar_lea.vmem %s1, %s238
          // Predicated region
          $region29: #{odconv2d_forward.1} parent=27 // pred_check
            _
          $region30: #{odconv2d_forward.1} parent=27 // pred_check_branch
            %241 = sbr.rel (0) target = $region32
          $region31: #{odconv2d_forward.1} parent=27 // pred_region
            // Predicated region
            $region33: #{odconv2d_forward.1} parent=31 // pred_check
              _
            $region34: #{odconv2d_forward.1} parent=31 // pred_check_branch
              %243 = sbr.rel target = $region36
            $region35: #{odconv2d_forward.1} parent=31 // pred_region
              // Predicated region
              $region48: #{odconv2d_forward.1} parent=35 // pred_check
                _
              $region49: #{odconv2d_forward.1} parent=35 // pred_check_branch
                %289 = sbr.rel (0) target = $region51
              $region50: #{odconv2d_forward.1} parent=35 // pred_region
                loop: start=0, step=1, limit=1
                $region52: #{odconv2d_forward.1} parent=50 // loop_pre_header
                  _
                $region53: #{odconv2d_forward.1} parent=50 // loop_header
                  %s291 = sphi 0, %s295
                  %p292 = scmp.ge.s32.totalorder %s291, 1
                  %s296 = sphi %s239, %s239
                  %s297 = sphi %s235, %s235
                $region54: #{odconv2d_forward.1} parent=50 // loop_header_branch
                  %294 = sbr.rel (%p292) target = $region58
                $region55: #{odconv2d_forward.1} parent=50 // loop_body
                  _
                $region56: #{odconv2d_forward.1} parent=50 // loop_footer
                  %s295 = sadd.s32 1, %s291
                $region57: #{odconv2d_forward.1} parent=50 // loop_footer_branch
                  %290 = sbr.rel target = $region53
                $region58: #{odconv2d_forward.1} parent=50 // loop_exit
                  _
                %s299 = ssub.s32 16, 1
                loop: start=0, step=1, limit=1
                $region59: #{odconv2d_forward.1} parent=50 // loop_pre_header
                  _
                $region60: #{odconv2d_forward.1} parent=50 // loop_header
                  %s301 = sphi 0, %s305
                  %p302 = scmp.ge.s32.totalorder %s301, 1
                  %s306 = sphi %s239, %s239
                  %s307 = sphi %s235, %s235
                $region61: #{odconv2d_forward.1} parent=50 // loop_header_branch
                  %304 = sbr.rel (%p302) target = $region65
                $region62: #{odconv2d_forward.1} parent=50 // loop_body
                  %v308 = vld [vmem:[%s306] sm:%s299]
                  %309 = vst [vmem:[%s307] sm:%s299] %v308
                  %v310 = vld [vmem:[%s306 + $0x8] sm:%s299]
                  %311 = vst [vmem:[%s307 + $0x4] sm:%s299] %v310
                  %v312 = vld [vmem:[%s306 + $0x10] sm:%s299]
                  %313 = vst [vmem:[%s307 + $0x8] sm:%s299] %v312
                  %v314 = vld [vmem:[%s306 + $0x18] sm:%s299]
                  %315 = vst [vmem:[%s307 + $0xc] sm:%s299] %v314
                  %v316 = vld [vmem:[%s306 + $0x20] sm:%s299]
                  %317 = vst [vmem:[%s307 + $0x10] sm:%s299] %v316
                  %v318 = vld [vmem:[%s306 + $0x28] sm:%s299]
                  %319 = vst [vmem:[%s307 + $0x14] sm:%s299] %v318
                  %v320 = vld [vmem:[%s306 + $0x30] sm:%s299]
                  %321 = vst [vmem:[%s307 + $0x18] sm:%s299] %v320
                  %v322 = vld [vmem:[%s306 + $0x38] sm:%s299]
                  %323 = vst [vmem:[%s307 + $0x1c] sm:%s299] %v322
                  %v324 = vld [vmem:[%s306 + $0x40] sm:%s299]
                  %325 = vst [vmem:[%s307 + $0x20] sm:%s299] %v324
                  %v326 = vld [vmem:[%s306 + $0x48] sm:%s299]
                  %327 = vst [vmem:[%s307 + $0x24] sm:%s299] %v326
                  %v328 = vld [vmem:[%s306 + $0x50] sm:%s299]
                  %329 = vst [vmem:[%s307 + $0x28] sm:%s299] %v328
                  %v330 = vld [vmem:[%s306 + $0x58] sm:%s299]
                  %331 = vst [vmem:[%s307 + $0x2c] sm:%s299] %v330
                  %v332 = vld [vmem:[%s306 + $0x60] sm:%s299]
                  %333 = vst [vmem:[%s307 + $0x30] sm:%s299] %v332
                  %v334 = vld [vmem:[%s306 + $0x68] sm:%s299]
                  %335 = vst [vmem:[%s307 + $0x34] sm:%s299] %v334
                  %v336 = vld [vmem:[%s306 + $0x70] sm:%s299]
                  %337 = vst [vmem:[%s307 + $0x38] sm:%s299] %v336
                  %v338 = vld [vmem:[%s306 + $0x78] sm:%s299]
                  %339 = vst [vmem:[%s307 + $0x3c] sm:%s299] %v338
                $region63: #{odconv2d_forward.1} parent=50 // loop_footer
                  %s305 = sadd.s32 1, %s301
                $region64: #{odconv2d_forward.1} parent=50 // loop_footer_branch
                  %300 = sbr.rel target = $region60
                $region65: #{odconv2d_forward.1} parent=50 // loop_exit
                  _
              $region51: #{odconv2d_forward.1} parent=35 // pred_fallthru
                _
            $region36: #{odconv2d_forward.1} parent=31 // pred_fallthru
              _
            // Predicated region
            $region37: #{odconv2d_forward.1} parent=31 // pred_check
              _
            $region38: #{odconv2d_forward.1} parent=31 // pred_check_branch
              %245 = sbr.rel (0) target = $region40
            $region39: #{odconv2d_forward.1} parent=31 // pred_region
              %s247 = ssub.s32 16, 1
              loop: start=0, step=1, limit=1
              $region41: #{odconv2d_forward.1} parent=39 // loop_pre_header
                _
              $region42: #{odconv2d_forward.1} parent=39 // loop_header
                %s249 = sphi 0, %s253
                %p250 = scmp.ge.s32.totalorder %s249, 1
                %s254 = sphi %s239, %s239
                %s255 = sphi %s235, %s235
              $region43: #{odconv2d_forward.1} parent=39 // loop_header_branch
                %252 = sbr.rel (%p250) target = $region47
              $region44: #{odconv2d_forward.1} parent=39 // loop_body
                %v256 = vld [vmem:[%s254] sm:%s247]
                %257 = vst [vmem:[%s255] sm:%s247] %v256
                %v258 = vld [vmem:[%s254 + $0x8] sm:%s247]
                %259 = vst [vmem:[%s255 + $0x4] sm:%s247] %v258
                %v260 = vld [vmem:[%s254 + $0x10] sm:%s247]
                %261 = vst [vmem:[%s255 + $0x8] sm:%s247] %v260
                %v262 = vld [vmem:[%s254 + $0x18] sm:%s247]
                %263 = vst [vmem:[%s255 + $0xc] sm:%s247] %v262
                %v264 = vld [vmem:[%s254 + $0x20] sm:%s247]
                %265 = vst [vmem:[%s255 + $0x10] sm:%s247] %v264
                %v266 = vld [vmem:[%s254 + $0x28] sm:%s247]
                %267 = vst [vmem:[%s255 + $0x14] sm:%s247] %v266
                %v268 = vld [vmem:[%s254 + $0x30] sm:%s247]
                %269 = vst [vmem:[%s255 + $0x18] sm:%s247] %v268
                %v270 = vld [vmem:[%s254 + $0x38] sm:%s247]
                %271 = vst [vmem:[%s255 + $0x1c] sm:%s247] %v270
                %v272 = vld [vmem:[%s254 + $0x40] sm:%s247]
                %273 = vst [vmem:[%s255 + $0x20] sm:%s247] %v272
                %v274 = vld [vmem:[%s254 + $0x48] sm:%s247]
                %275 = vst [vmem:[%s255 + $0x24] sm:%s247] %v274
                %v276 = vld [vmem:[%s254 + $0x50] sm:%s247]
                %277 = vst [vmem:[%s255 + $0x28] sm:%s247] %v276
                %v278 = vld [vmem:[%s254 + $0x58] sm:%s247]
                %279 = vst [vmem:[%s255 + $0x2c] sm:%s247] %v278
                %v280 = vld [vmem:[%s254 + $0x60] sm:%s247]
                %281 = vst [vmem:[%s255 + $0x30] sm:%s247] %v280
                %v282 = vld [vmem:[%s254 + $0x68] sm:%s247]
                %283 = vst [vmem:[%s255 + $0x34] sm:%s247] %v282
                %v284 = vld [vmem:[%s254 + $0x70] sm:%s247]
                %285 = vst [vmem:[%s255 + $0x38] sm:%s247] %v284
                %v286 = vld [vmem:[%s254 + $0x78] sm:%s247]
                %287 = vst [vmem:[%s255 + $0x3c] sm:%s247] %v286
              $region45: #{odconv2d_forward.1} parent=39 // loop_footer
                %s253 = sadd.s32 1, %s249
              $region46: #{odconv2d_forward.1} parent=39 // loop_footer_branch
                %248 = sbr.rel target = $region42
              $region47: #{odconv2d_forward.1} parent=39 // loop_exit
                _
            $region40: #{odconv2d_forward.1} parent=31 // pred_fallthru
              _
          $region32: #{odconv2d_forward.1} parent=27 // pred_fallthru
            _
          %340 = vnop
        $region28: #{odconv2d_forward.1} parent=23 // pred_fallthru
          _
        // Predicated region
        $region66: #{odconv2d_forward.1} parent=23 // pred_check
          %p341 = pneg %p105
        $region67: #{odconv2d_forward.1} parent=23 // pred_check_branch
          %343 = sbr.rel (%p341) target = $region69
        $region68: #{odconv2d_forward.1} parent=23 // pred_region
          %p344 = scmp.lt.s32.totalorder %s20, 1
          %s345 = scalar_select %p344, %s20, 1
          %s346 = scalar_lea.vmem %s2, %s345
        $region69: #{odconv2d_forward.1} parent=23 // pred_fallthru
          _
        // Predicated region
        $region70: #{odconv2d_forward.1} parent=23 // pred_check
          %p347 = pneg %p133
        $region71: #{odconv2d_forward.1} parent=23 // pred_check_branch
          %349 = sbr.rel (%p347) target = $region73
        $region72: #{odconv2d_forward.1} parent=23 // pred_region
          %s350 = smul.u32 2, %s19
          %p351 = scmp.lt.s32.totalorder %s20, 1
          %s352 = scalar_select %p351, %s20, 1
          %p353 = scmp.lt.s32.totalorder %s350, 1
          %s354 = scalar_select %p353, %s350, 1
          %s355 = smul.addr %s352, 2
          %s356 = sadd.s32 %s354, %s355
          %s357 = smul.addr %s356, 8
          %s358 = scalar_lea.vmem %s3, %s357
          %s359 = smul.u32 2, %s19
        $region73: #{odconv2d_forward.1} parent=23 // pred_fallthru
          _
      $region24: #{odconv2d_forward.1} parent=5 // pred_fallthru
        _
      %p360 = scmp.le.s32.totalorder 1, %s12
      %p361 = scmp.lt.s32.totalorder %s12, 5
      %p362 = pnand %p360, %p361
      %p363 = pneg %p362
      // Predicated region
      $region74: #{odconv2d_forward.1} parent=5 // pred_check
        _
      $region75: #{odconv2d_forward.1} parent=5 // pred_check_branch
        %365 = sbr.rel (%p362) target = $region77
      $region76: #{odconv2d_forward.1} parent=5 // pred_region
        %s366 = ssub.s32 %s12, 1
        %s367 = sand.u32 %s72, 1
        %s368 = sand.u32 %s72, 1
        %s369 = smul.addr %s368, 64
        %s370 = scalar_lea.vmem [#allocation3], %s369
        // Predicated region
        $region78: #{odconv2d_forward.1} parent=76 // pred_check
          %p371 = pneg %p85
        $region79: #{odconv2d_forward.1} parent=76 // pred_check_branch
          %373 = sbr.rel (%p371) target = $region81
        $region80: #{odconv2d_forward.1} parent=76 // pred_region
          _
        $region81: #{odconv2d_forward.1} parent=76 // pred_fallthru
          _
        // Predicated region
        $region82: #{odconv2d_forward.1} parent=76 // pred_check
          %p374 = pneg %p160
        $region83: #{odconv2d_forward.1} parent=76 // pred_check_branch
          %376 = sbr.rel (%p374) target = $region85
        $region84: #{odconv2d_forward.1} parent=76 // pred_region
          %377 = dma.done [#allocation5], 32
        $region85: #{odconv2d_forward.1} parent=76 // pred_fallthru
          _
        %378 = sfence
        %s379 = smul.u32 2, %s22
        %p380 = scmp.lt.s32.totalorder %s379, 1
        %s381 = scalar_select %p380, %s379, 1
        %s382 = smul.addr %s381, 4
        %s383 = scalar_lea.vmem %s0, %s382
        %p384 = pneg %p57
        %p385 = pneg %p54
        %s386 = sand.u32 %s72, 1
        %s387 = sand.u32 %s72, 1
        %s388 = smul.addr %s387, 64
        %s389 = scalar_lea.vmem [#allocation3], %s388
        %p390 = pneg %p85
        %p391 = pneg %p82
        %p392 = scmp.lt.s32.totalorder %s23, 1
        %s393 = scalar_select %p392, %s23, 1
        %s394 = scalar_lea.vmem %s2, %s393
        %p395 = pneg %p111
        %p396 = pneg %p108
        %s397 = smul.u32 2, %s22
        %p398 = scmp.lt.s32.totalorder %s23, 1
        %s399 = scalar_select %p398, %s23, 1
        %p400 = scmp.lt.s32.totalorder %s397, 1
        %s401 = scalar_select %p400, %s397, 1
        %s402 = smul.addr %s399, 2
        %s403 = sadd.s32 %s401, %s402
        %s404 = smul.addr %s403, 8
        %s405 = scalar_lea.vmem %s3, %s404
        %p406 = pneg %p139
        %p407 = pneg %p136
        %p408 = pneg %p160
        %p409 = pneg %p157
        %p410 = pneg %p190
        %p411 = pneg %p187
        %s412 = sand.u32 %s177, 1
        %s413 = sand.u32 %s177, 1
        %s414 = smul.addr %s413, 8
        %s415 = scalar_lea.vmem [#allocation6], %s414
        %s416 = smul.u32 2, %s22
        %p417 = scmp.lt.s32.totalorder %s416, 1
        %s418 = scalar_select %p417, %s416, 1
        %s419 = smul.addr %s418, 4
        %s420 = scalar_lea.vmem %s0, %s419
        %s421 = smul.u32 2, %s22
        %p422 = scmp.lt.s32.totalorder %s23, 1
        %s423 = scalar_select %p422, %s23, 1
        %s424 = scalar_lea.vmem %s2, %s423
        %s425 = smul.u32 2, %s22
        %p426 = scmp.lt.s32.totalorder %s23, 1
        %s427 = scalar_select %p426, %s23, 1
        %p428 = scmp.lt.s32.totalorder %s425, 1
        %s429 = scalar_select %p428, %s425, 1
        %s430 = smul.addr %s427, 2
        %s431 = sadd.s32 %s429, %s430
        %s432 = smul.addr %s431, 8
        %s433 = scalar_lea.vmem %s3, %s432
        %s434 = smul.u32 2, %s22
        %s435 = smul.u32 2, %s22
        %p437 = scmp.eq.s32.totalorder %s24, 0
        // Predicated region
        $region86: #{odconv2d_forward.1} parent=76 // pred_check
          %p438 = pneg %p437
        $region87: #{odconv2d_forward.1} parent=76 // pred_check_branch
          %440 = sbr.rel (%p438) target = $region89
        $region88: #{odconv2d_forward.1} parent=76 // pred_region
          %s441 = smul.u32 %s23, 128
          %s442 = sld [smem:[#allocation4 + %s441]]
          %v443 = vld [vmem:[%s420] sm:$0xf]
          %v444 = vld [vmem:[%s420 + $0x4] sm:$0xf]
          %v445 = vunpack.c.l.bf16 %v443
          %v446 = vunpack.c.l.bf16 %v444
          %v447 = vstv %s442
          %v448 = vmul.f32 %v447, %v445
          %v449 = vmul.f32 %v447, %v446
          %s450 = sadd.s32 %s441, 1
          %s451 = sld [smem:[#allocation4 + %s450]]
          %s452 = scalar_lea.vmem %s420, 8
          %v453 = vld [vmem:[%s452] sm:$0xf]
          %v454 = vld [vmem:[%s452 + $0x4] sm:$0xf]
          %v455 = vunpack.c.l.bf16 %v453
          %v456 = vunpack.c.l.bf16 %v454
          %v457 = vstv %s451
          %v458 = vmul.f32 %v457, %v455
          %v459 = vmul.f32 %v457, %v456
          %v460 = vadd.f32 %v448, %v458
          %v461 = vadd.f32 %v449, %v459
          %s462 = sadd.s32 %s441, 2
          %s463 = sld [smem:[#allocation4 + %s462]]
          %s464 = scalar_lea.vmem %s420, 16
          %v465 = vld [vmem:[%s464] sm:$0xf]
          %v466 = vld [vmem:[%s464 + $0x4] sm:$0xf]
          %v467 = vunpack.c.l.bf16 %v465
          %v468 = vunpack.c.l.bf16 %v466
          %v469 = vstv %s463
          %v470 = vmul.f32 %v469, %v467
          %v471 = vmul.f32 %v469, %v468
          %v472 = vadd.f32 %v460, %v470
          %v473 = vadd.f32 %v461, %v471
          %s474 = sadd.s32 %s441, 3
          %s475 = sld [smem:[#allocation4 + %s474]]
          %s476 = scalar_lea.vmem %s420, 24
          %v477 = vld [vmem:[%s476] sm:$0xf]
          %v478 = vld [vmem:[%s476 + $0x4] sm:$0xf]
          %v479 = vunpack.c.l.bf16 %v477
          %v480 = vunpack.c.l.bf16 %v478
          %v481 = vstv %s475
          %v482 = vmul.f32 %v481, %v479
          %v483 = vmul.f32 %v481, %v480
          %v484 = vadd.f32 %v472, %v482
          %v485 = vadd.f32 %v473, %v483
          %v486 = vld [vmem:[%s424] sm:$0x1]
          %v488 = vlaneseq
          %v489 = vshrl.u32 %v488, 7
          %v490 = vsub.s32 0, %v489
          %v491 = vrot.slane %v486, %v490
          %v493 = vmul.f32 %v484, %v491
          %v494 = vmul.f32 %v485, %v491
          %v495 = vpack.c.bf16 %v494, %v493
          %v497 = vunpack.c.l.b16 %v495
          %v498 = vunpack.c.h.b16 %v495
          %v499 = vpack.c.b16 %v497, %v497
          %v500 = vpack.c.b16 %v498, %v498
          %503 = vst [vmem:[#allocation2] sm:$0xf] %v499
          %504 = vst [vmem:[#allocation2 + $0x4] sm:$0xf] %v500
        $region89: #{odconv2d_forward.1} parent=76 // pred_fallthru
          _
        %v505 = vld [vmem:[#allocation2] sm:$0xf]
        %v506 = vld [vmem:[#allocation2 + $0x4] sm:$0xf]
        %v507 = vld [vmem:[%s370] sm:$0xf]
        %v508 = vld [vmem:[%s370 + $0x4] sm:$0xf]
        %v509 = vld [vmem:[%s370 + $0x8] sm:$0xf]
        %v510 = vld [vmem:[%s370 + $0xc] sm:$0xf]
        %v511 = vld [vmem:[%s370 + $0x10] sm:$0xf]
        %v512 = vld [vmem:[%s370 + $0x14] sm:$0xf]
        %v513 = vld [vmem:[%s370 + $0x18] sm:$0xf]
        %v514 = vld [vmem:[%s370 + $0x1c] sm:$0xf]
        %v515 = vld [vmem:[%s370 + $0x20] sm:$0xf]
        %v516 = vld [vmem:[%s370 + $0x24] sm:$0xf]
        %v517 = vld [vmem:[%s370 + $0x28] sm:$0xf]
        %v518 = vld [vmem:[%s370 + $0x2c] sm:$0xf]
        %v519 = vld [vmem:[%s370 + $0x30] sm:$0xf]
        %v520 = vld [vmem:[%s370 + $0x34] sm:$0xf]
        %v521 = vld [vmem:[%s370 + $0x38] sm:$0xf]
        %v522 = vld [vmem:[%s370 + $0x3c] sm:$0xf]
        %v525 = vunpack.c.l.b16 %v505
        %v526 = vunpack.c.l.b16 %v506
        %v527 = vpack.c.b16 %v526, %v525
        %v545 = vunpack.c.l.b16 %v507
        %v546 = vunpack.c.l.b16 %v508
        %v547 = vunpack.c.l.b16 %v509
        %v548 = vunpack.c.l.b16 %v510
        %v549 = vunpack.c.l.b16 %v511
        %v550 = vunpack.c.l.b16 %v512
        %v551 = vunpack.c.l.b16 %v513
        %v552 = vunpack.c.l.b16 %v514
        %v553 = vunpack.c.l.b16 %v515
        %v554 = vunpack.c.l.b16 %v516
        %v555 = vunpack.c.l.b16 %v517
        %v556 = vunpack.c.l.b16 %v518
        %v557 = vunpack.c.l.b16 %v519
        %v558 = vunpack.c.l.b16 %v520
        %v559 = vunpack.c.l.b16 %v521
        %v560 = vunpack.c.l.b16 %v522
        %v561 = vpack.c.b16 %v546, %v545
        %v562 = vpack.c.b16 %v548, %v547
        %v563 = vpack.c.b16 %v550, %v549
        %v564 = vpack.c.b16 %v552, %v551
        %v565 = vpack.c.b16 %v554, %v553
        %v566 = vpack.c.b16 %v556, %v555
        %v567 = vpack.c.b16 %v558, %v557
        %v568 = vpack.c.b16 %v560, %v559
        %577 = vmatprep.subr.bf16.mxu0 0
        %578 = vmatpush1.bf16.msra.mxu0 %v568
        %579 = vmatprep.subr.bf16.mxu0 0
        %580 = vmatpush1.bf16.msra.mxu0 %v567
        %581 = vmatprep.subr.bf16.mxu0 0
        %582 = vmatpush1.bf16.msra.mxu0 %v566
        %583 = vmatprep.subr.bf16.mxu0 0
        %584 = vmatpush1.bf16.msra.mxu0 %v565
        %585 = vmatprep.subr.bf16.mxu0 0
        %586 = vmatpush1.bf16.msra.mxu0 %v564
        %587 = vmatprep.subr.bf16.mxu0 0
        %588 = vmatpush1.bf16.msra.mxu0 %v563
        %589 = vmatprep.subr.bf16.mxu0 0
        %590 = vmatpush1.bf16.msra.mxu0 %v562
        %591 = vmatprep.subr.bf16.mxu0 0
        %592 = vmatpush1.bf16.msra.mxu0 %v561
        %593 = vmatprep.subr.bf16.mxu0 0
        %594 = vmatpush2.bf16.msra.mxu0 0
        %595 = vmatprep.subr.bf16.mxu0 0
        %596 = vmatpush2.bf16.msra.mxu0 0
        %597 = vmatprep.subr.bf16.mxu0 0
        %598 = vmatpush2.bf16.msra.mxu0 0
        %599 = vmatprep.subr.bf16.mxu0 0
        %600 = vmatpush2.bf16.msra.mxu0 0
        %601 = vmatprep.subr.bf16.mxu0 0
        %602 = vmatpush2.bf16.msra.mxu0 0
        %603 = vmatprep.subr.bf16.mxu0 0
        %604 = vmatpush2.bf16.msra.mxu0 0
        %605 = vmatprep.subr.bf16.mxu0 0
        %606 = vmatpush2.bf16.msra.mxu0 0
        %607 = vmatprep.subr.bf16.mxu0 0
        %608 = vmatpush2.bf16.msra.mxu0 0
        %609 = vmatprep.mubr.bf16.mxu0 0
        %610 = vmatmul.mubr.bf16.gmra.mxu0 %v527
        %v611 = vpop.f32.mrf.mxu0
        %v612 = vadd.f32 0.0, %v611
        %v613 = vpop.f32.mrf.mxu0
        %v614 = vpop.f32.mrf.mxu0
        %v615 = vadd.f32 0.0, %v614
        %v616 = vpop.f32.mrf.mxu0
        %617 = vdwg.mxu0
        %v618 = vld [vmem:[%s433] sm:$0xff]
        %v619 = vld [vmem:[%s433 + $0x8] sm:$0xff]
        %621 = vset.pattern.permute.xlu0 0
        %622 = vperm.xlu0 %621, %v618
        %v623 = vpop.permute.xlu0 %622
        %626 = vset.pattern.permute.xlu0 0
        %627 = vperm.xlu0 %626, %v619
        %v628 = vpop.permute.xlu0 %627
        %v630 = vmul.f32 %v612, %v623
        %v631 = vmul.f32 %v615, %v628
        %v632 = vpack.c.bf16 %v631, %v630
        %v634 = vunpack.c.l.b16 %v632
        %v635 = vunpack.c.h.b16 %v632
        %v636 = vpack.c.b16 %v634, %v634
        %v637 = vpack.c.b16 %v635, %v635
        %640 = vst [vmem:[%s415] sm:$0xf] %v636
        %641 = vst [vmem:[%s415 + $0x4] sm:$0xf] %v637
        %s642 = sand.u32 %s177, 1
        %s643 = sand.u32 %s177, 1
        %s644 = smul.addr %s643, 8
        %s645 = scalar_lea.vmem [#allocation6], %s644
        // Predicated region
        $region90: #{odconv2d_forward.1} parent=76 // pred_check
          %p646 = pneg %p187
        $region91: #{odconv2d_forward.1} parent=76 // pred_check_branch
          %648 = sbr.rel (%p646) target = $region93
        $region92: #{odconv2d_forward.1} parent=76 // pred_region
          %s649 = smul.u32 2, %s22
          %s650 = smul.addr %s649, 2
          %s651 = sadd.s32 %s24, %s650
          %s652 = smul.addr %s23, 4
          %s653 = sadd.s32 %s651, %s652
          %s654 = smul.addr %s653, 4
          %s655 = scalar_lea.vmem %s5, %s654
          // Predicated region
          $region94: #{odconv2d_forward.1} parent=92 // pred_check
            _
          $region95: #{odconv2d_forward.1} parent=92 // pred_check_branch
            %657 = sbr.rel (0) target = $region97
          $region96: #{odconv2d_forward.1} parent=92 // pred_region
            // Predicated region
            $region98: #{odconv2d_forward.1} parent=96 // pred_check
              _
            $region99: #{odconv2d_forward.1} parent=96 // pred_check_branch
              %659 = sbr.rel target = $region101
            $region100: #{odconv2d_forward.1} parent=96 // pred_region
              // Predicated region
              $region113: #{odconv2d_forward.1} parent=100 // pred_check
                _
              $region114: #{odconv2d_forward.1} parent=100 // pred_check_branch
                %677 = sbr.rel (0) target = $region116
              $region115: #{odconv2d_forward.1} parent=100 // pred_region
                loop: start=0, step=1, limit=1
                $region117: #{odconv2d_forward.1} parent=115 // loop_pre_header
                  _
                $region118: #{odconv2d_forward.1} parent=115 // loop_header
                  %s679 = sphi 0, %s683
                  %p680 = scmp.ge.s32.totalorder %s679, 1
                  %s684 = sphi %s645, %s645
                  %s685 = sphi %s655, %s655
                $region119: #{odconv2d_forward.1} parent=115 // loop_header_branch
                  %682 = sbr.rel (%p680) target = $region123
                $region120: #{odconv2d_forward.1} parent=115 // loop_body
                  _
                $region121: #{odconv2d_forward.1} parent=115 // loop_footer
                  %s683 = sadd.s32 1, %s679
                $region122: #{odconv2d_forward.1} parent=115 // loop_footer_branch
                  %678 = sbr.rel target = $region118
                $region123: #{odconv2d_forward.1} parent=115 // loop_exit
                  _
                %s687 = ssub.s32 16, 1
                loop: start=0, step=1, limit=1
                $region124: #{odconv2d_forward.1} parent=115 // loop_pre_header
                  _
                $region125: #{odconv2d_forward.1} parent=115 // loop_header
                  %s689 = sphi 0, %s693
                  %p690 = scmp.ge.s32.totalorder %s689, 1
                  %s694 = sphi %s645, %s645
                  %s695 = sphi %s655, %s655
                $region126: #{odconv2d_forward.1} parent=115 // loop_header_branch
                  %692 = sbr.rel (%p690) target = $region130
                $region127: #{odconv2d_forward.1} parent=115 // loop_body
                  %v696 = vld [vmem:[%s694] sm:%s687]
                  %697 = vst [vmem:[%s695] sm:%s687] %v696
                  %v698 = vld [vmem:[%s694 + $0x4] sm:%s687]
                  %699 = vst [vmem:[%s695 + $0x8] sm:%s687] %v698
                $region128: #{odconv2d_forward.1} parent=115 // loop_footer
                  %s693 = sadd.s32 1, %s689
                $region129: #{odconv2d_forward.1} parent=115 // loop_footer_branch
                  %688 = sbr.rel target = $region125
                $region130: #{odconv2d_forward.1} parent=115 // loop_exit
                  _
              $region116: #{odconv2d_forward.1} parent=100 // pred_fallthru
                _
            $region101: #{odconv2d_forward.1} parent=96 // pred_fallthru
              _
            // Predicated region
            $region102: #{odconv2d_forward.1} parent=96 // pred_check
              _
            $region103: #{odconv2d_forward.1} parent=96 // pred_check_branch
              %661 = sbr.rel (0) target = $region105
            $region104: #{odconv2d_forward.1} parent=96 // pred_region
              %s663 = ssub.s32 16, 1
              loop: start=0, step=1, limit=1
              $region106: #{odconv2d_forward.1} parent=104 // loop_pre_header
                _
              $region107: #{odconv2d_forward.1} parent=104 // loop_header
                %s665 = sphi 0, %s669
                %p666 = scmp.ge.s32.totalorder %s665, 1
                %s670 = sphi %s645, %s645
                %s671 = sphi %s655, %s655
              $region108: #{odconv2d_forward.1} parent=104 // loop_header_branch
                %668 = sbr.rel (%p666) target = $region112
              $region109: #{odconv2d_forward.1} parent=104 // loop_body
                %v672 = vld [vmem:[%s670] sm:%s663]
                %673 = vst [vmem:[%s671] sm:%s663] %v672
                %v674 = vld [vmem:[%s670 + $0x4] sm:%s663]
                %675 = vst [vmem:[%s671 + $0x8] sm:%s663] %v674
              $region110: #{odconv2d_forward.1} parent=104 // loop_footer
                %s669 = sadd.s32 1, %s665
              $region111: #{odconv2d_forward.1} parent=104 // loop_footer_branch
                %664 = sbr.rel target = $region107
              $region112: #{odconv2d_forward.1} parent=104 // loop_exit
                _
            $region105: #{odconv2d_forward.1} parent=96 // pred_fallthru
              _
          $region97: #{odconv2d_forward.1} parent=92 // pred_fallthru
            _
          %700 = vnop
        $region93: #{odconv2d_forward.1} parent=76 // pred_fallthru
          _
      $region77: #{odconv2d_forward.1} parent=5 // pred_fallthru
        _
      %p701 = scmp.le.s32.totalorder 2, %s12
      // Predicated region
      $region131: #{odconv2d_forward.1} parent=5 // pred_check
        %p702 = pneg %p701
      $region132: #{odconv2d_forward.1} parent=5 // pred_check_branch
        %704 = sbr.rel (%p702) target = $region134
      $region133: #{odconv2d_forward.1} parent=5 // pred_region
        %s705 = ssub.s32 %s12, 2
        // Predicated region
        $region135: #{odconv2d_forward.1} parent=133 // pred_check
          %p706 = pneg %p193
        $region136: #{odconv2d_forward.1} parent=133 // pred_check_branch
          %708 = sbr.rel (%p706) target = $region138
        $region137: #{odconv2d_forward.1} parent=133 // pred_region
          %s709 = sand.u32 %s178, 1
          %s710 = sand.u32 %s178, 1
          %s711 = smul.addr %s710, 8
          %s712 = scalar_lea.vmem [#allocation6], %s711
        $region138: #{odconv2d_forward.1} parent=133 // pred_fallthru
          _
      $region134: #{odconv2d_forward.1} parent=5 // pred_fallthru
        _
    $region6: #{odconv2d_forward.1} parent=1 // loop_footer
      %s16 = sadd.s32 1, %s12
    $region7: #{odconv2d_forward.1} parent=1 // loop_footer_branch
      %11 = sbr.rel target = $region3
    $region8: #{odconv2d_forward.1} parent=1 // loop_exit
      _
    %713 = vsyncpa [#allocation5], 1
    %s714 = scalar_lea.sflag [#allocation5], 1
    %715 = vsyncpa %s714, 1

</llo_original>
